<compile_context>
chip_gen: v7x
topology: tpu7x:2x2x1
jax: 0.10.0
libtpu: 0.0.40
codegen_flags: <defaults>
</compile_context>

<pallas_src>
import jax
import jax.numpy as jnp
from jax.experimental import pallas as pl
from jax.experimental.pallas import tpu as pltpu


def _round_up(x: int, m: int) -> int:
    return (x + m - 1) // m * m


# ---------------------------------------------------------------------------
# Pallas kernel: o = x * w + b   (w, b broadcast over the sublane/batch axis)
# ---------------------------------------------------------------------------

def _add_mark_kernel(x_ref, w_ref, b_ref, o_ref):
    # x: (TM, TN) in the caller's dtype; w, b: (1, TN) f32 rows.
    x = x_ref[...].astype(jnp.float32)
    o_ref[...] = (x * w_ref[...] + b_ref[...]).astype(o_ref.dtype)


# ---------------------------------------------------------------------------
# Wrapper (mirrors AddMark.forward / add_mark)
# ---------------------------------------------------------------------------

def add_mark(mask, pattern, x, *, tile_m: int = 256, tile_n: int = 4096,
             min_pallas_bytes: int = 1 << 20):
    """x * (1 - mask) + pattern * mask, mask/pattern broadcast over batch.

    Output dtype matches x.dtype; arithmetic is done in f32 inside the kernel.
    """
    orig_shape = x.shape
    img_shape = orig_shape[1:]            # per-image shape (broadcast target)
    out_dtype = x.dtype

    # Loop-invariant rows, computed once (tiny: (1, F), f32).
    m = mask.astype(jnp.float32)
    p = pattern.astype(jnp.float32)
    w = jnp.broadcast_to(1.0 - m, img_shape).reshape(1, -1)      # (1, F)
    b = jnp.broadcast_to(p * m, img_shape).reshape(1, -1)        # (1, F)

    B = orig_shape[0]
    F = w.shape[1]

    # Fast path: for tiny inputs a standalone pallas_call (fixed overhead) is
    # slower than letting XLA fuse the elementwise expression.
    if B * F * x.dtype.itemsize < min_pallas_bytes:
        y = x.reshape(B, F).astype(jnp.float32) * w + b
        return y.astype(out_dtype).reshape(orig_shape)

    x2 = x.reshape(B, F)                  # lane-dense view; no copy, no pad

    # Tile sizes: sublane/lane aligned; blocks need not divide (B, F) — Pallas
    # masks the partial edge blocks.
    tm = min(tile_m, _round_up(B, 8))
    tn = min(tile_n, _round_up(F, 128))
    grid_b = pl.cdiv(B, tm)
    grid_f = pl.cdiv(F, tn)

    # v7x has 2 TensorCores: make sure at least one "parallel" axis has >= 2
    # steps when the batch axis collapses to a single tile (harmless elsewhere).
    if grid_b == 1 and grid_f == 1 and F > 128:
        tn = max(128, _round_up(pl.cdiv(F, 2), 128))
        grid_f = pl.cdiv(F, tn)

    out2 = pl.pallas_call(
        _add_mark_kernel,
        out_shape=jax.ShapeDtypeStruct((B, F), out_dtype),
        grid=(grid_b, grid_f),
        in_specs=[
            pl.BlockSpec((tm, tn), lambda i, j: (i, j)),   # x tile (native dtype)
            pl.BlockSpec((1, tn), lambda i, j: (0, j)),    # w row (sublane-bcast)
            pl.BlockSpec((1, tn), lambda i, j: (0, j)),    # b row
        ],
        out_specs=pl.BlockSpec((tm, tn), lambda i, j: (i, j)),
        compiler_params=pltpu.CompilerParams(
            dimension_semantics=("parallel", "parallel"),
            vmem_limit_bytes=32 << 20,     # ~16 MiB actually used; safe on v7x
        ),
    )(x2, w, b)

    return out2.reshape(orig_shape)


class AddMark:
    """Mirror of the PyTorch AddMark module."""

    def __init__(self, mask, pattern):
        self.mask = mask
        self.pattern = pattern

    def __call__(self, x, **kw):
        return add_mark(self.mask, self.pattern, x, **kw)


if __name__ == "__main__":
    key = jax.random.PRNGKey(0)
    kx, km, kp, kx2 = jax.random.split(key, 4)

    # Small shapes consistent with the module: batch=2, channels=4, spatial=16.
    x = jax.random.normal(kx, (2, 4, 16, 16), jnp.float32)
    mask = (jax.random.uniform(km, (1, 16, 16), jnp.float32) > 0.8).astype(jnp.float32)
    pattern = jax.random.uniform(kp, (4, 16, 16), jnp.float32)

    marker = AddMark(mask, pattern)

    # Force the Pallas path (min_pallas_bytes=0) so the kernel is exercised.
    run = jax.jit(lambda a: marker(a, min_pallas_bytes=0))
    out = jax.block_until_ready(run(x))
    ref = x * (1.0 - mask) + pattern * mask
    assert out.shape == x.shape and out.dtype == x.dtype
    assert jnp.allclose(out, ref, atol=1e-6), "mismatch vs. reference add_mark"

    # Non-(8,128)-aligned shape: exercises partial edge blocks (no pad/slice).
    x_odd = jax.random.normal(kx2, (3, 3, 10, 10), jnp.float32)
    mask_odd = (jax.random.uniform(km, (1, 10, 10), jnp.float32) > 0.8).astype(jnp.float32)
    pattern_odd = jax.random.uniform(kp, (3, 10, 10), jnp.float32)
    out_odd = jax.block_until_ready(
        jax.jit(lambda a: add_mark(mask_odd, pattern_odd, a, min_pallas_bytes=0))(x_odd))
    ref_odd = x_odd * (1.0 - mask_odd) + pattern_odd * mask_odd
    assert jnp.allclose(out_odd, ref_odd, atol=1e-6), "mismatch on unaligned shape"

    print("KERNEL_OK")
</pallas_src>

<mosaic_0001>
module attributes {stable_mosaic.version = 11 : i64} {
  func.func @_add_mark_kernel(%arg0: i32, %arg1: i32, %arg2: memref<8x512xf32, #tpu.memory_space<vmem>>, %arg3: memref<1x512xf32, #tpu.memory_space<vmem>>, %arg4: memref<1x512xf32, #tpu.memory_space<vmem>>, %arg5: memref<8x512xf32, #tpu.memory_space<vmem>>) attributes {dimension_semantics = [#tpu.dimension_semantics<parallel>, #tpu.dimension_semantics<parallel>], iteration_bounds = array<i64: 1, 2>, scalar_prefetch = 0 : i64, scratch_operands = 0 : i64, tpu.core_type = #tpu.core_type<tc>, window_params = [{transform_indices = @transform_0, window_bounds = array<i64: 8, 512>}, {transform_indices = @transform_1, window_bounds = array<i64: 1, 512>}, {transform_indices = @transform_2, window_bounds = array<i64: 1, 512>}, {transform_indices = @transform_3, window_bounds = array<i64: 8, 512>}]} {
    %c0 = arith.constant 0 : index
    %c0_0 = arith.constant 0 : index
    %0 = vector.load %arg2[%c0, %c0_0] : memref<8x512xf32, #tpu.memory_space<vmem>>, vector<8x512xf32>
    %c0_1 = arith.constant 0 : index
    %c0_2 = arith.constant 0 : index
    %1 = vector.load %arg3[%c0_1, %c0_2] : memref<1x512xf32, #tpu.memory_space<vmem>>, vector<1x512xf32>
    %2 = vector.broadcast %1 : vector<1x512xf32> to vector<8x512xf32>
    %3 = arith.mulf %0, %2 : vector<8x512xf32>
    %c0_3 = arith.constant 0 : index
    %c0_4 = arith.constant 0 : index
    %4 = vector.load %arg4[%c0_3, %c0_4] : memref<1x512xf32, #tpu.memory_space<vmem>>, vector<1x512xf32>
    %5 = vector.broadcast %4 : vector<1x512xf32> to vector<8x512xf32>
    %6 = arith.addf %3, %5 : vector<8x512xf32>
    %c0_5 = arith.constant 0 : index
    %c0_6 = arith.constant 0 : index
    %7 = vector.load %arg5[%c0_5, %c0_6] : memref<8x512xf32, #tpu.memory_space<vmem>>, vector<8x512xf32>
    tpu.vector_store %arg5[%c0_5, %c0_6], %6 {strides = array<i32>} : memref<8x512xf32, #tpu.memory_space<vmem>>, vector<8x512xf32>,
    return
  }
  func.func @transform_0(%arg0: i32, %arg1: i32) -> (i32, i32) {
    %c0_i32 = arith.constant 0 : i32
    return %arg0, %arg1 : i32, i32
  }
  func.func @transform_1(%arg0: i32, %arg1: i32) -> (i32, i32) {
    %c0_i32 = arith.constant 0 : i32
    %c0_i32_0 = arith.constant 0 : i32
    return %c0_i32, %arg1 : i32, i32
  }
  func.func @transform_2(%arg0: i32, %arg1: i32) -> (i32, i32) {
    %c0_i32 = arith.constant 0 : i32
    %c0_i32_0 = arith.constant 0 : i32
    return %c0_i32, %arg1 : i32, i32
  }
  func.func @transform_3(%arg0: i32, %arg1: i32) -> (i32, i32) {
    %c0_i32 = arith.constant 0 : i32
    return %arg0, %arg1 : i32, i32
  }
}

</mosaic_0001>

<llo_original>
// kernel: _lambda_.1
$region0: #{_lambda_.1}
  #allocation0 [shape = 'u32[]', space=smem, size = 0x4, offset = 0x4, fixed_abs, tag = 'smem constant byte address 0x4 - core index']
  #allocation1 [shape = 'u32[144,128]{1,0:T(1,128)}', space=vmem, size = 0x12000, scoped, tag = 'internal scratch']
  %s0 = inlined_call_operand.vmem [shape: f32[2,1024], index: 0, kind: input, shape index: {}]
  %s1 = inlined_call_operand.vmem [shape: f32[1,1024], index: 1, kind: input, shape index: {}]
  %s2 = inlined_call_operand.vmem [shape: f32[1,1024], index: 2, kind: input, shape index: {}]
  %s3 = inlined_call_operand.vmem [shape: f32[2,1024], index: 3, kind: output, shape index: {}]
  %s4 = sld [smem:[#allocation0]]
  $region117: #{_lambda_.1} parent=0
    _
  %s6 = ssub.s32 1, %s4
  %s7 = scalar_select 0, %s6, %s4
  $region1: #{_lambda_.1} parent=0
    #allocation2 [shape = 'u8[32768]{0}', space=vmem, size = 0x8000, scoped, tag = 'input window, operand 0']
    #allocation3 [shape = 'u8[32768]{0}', space=vmem, size = 0x8000, scoped, tag = 'output window, operand 0']
    loop: start=0, step=1, limit=4
    $region2: #{_lambda_.1} parent=1 // loop_pre_header
      _
    $region3: #{_lambda_.1} parent=1 // loop_header
      %s9 = sphi 0, %s13
      %p10 = scmp.ge.s32.totalorder %s9, 4
      %s16 = sphi 0, %s28
      %s17 = sphi 0, %s24
      %s18 = sphi 0, %s16
      %s19 = sphi 0, %s17
      %s20 = sphi 0, %s18
      %s21 = sphi 0, %s19
      %s33 = sphi 0, %s35
      %s36 = sphi 0, %s33
      %s37 = sphi 0, %s36
      %s53 = sphi 0, %s37
      %s59 = sphi 0, %s61
      %s62 = sphi 0, %s59
      %s63 = sphi 0, %s62
      %s79 = sphi 0, %s63
      %s85 = sphi 0, %s87
      %s88 = sphi 0, %s85
      %s89 = sphi 0, %s88
      %s105 = sphi 0, %s89
      %s113 = sphi 0, %s115
      %s116 = sphi 0, %s113
      %s117 = sphi 0, %s116
      %s133 = sphi 0, %s117
    $region4: #{_lambda_.1} parent=1 // loop_header_branch
      %12 = sbr.rel (%p10) target = $region8
    $region5: #{_lambda_.1} parent=1 // loop_body
      %s14 = ssub.s32 %s9, 1
      %s15 = ssub.s32 %s9, 2
      %s22 = sadd.s32 1, %s17
      %p23 = scmp.ge.s32.totalorder %s22, 2
      %s24 = scalar_select %p23, 0, %s22
      %s25 = sadd.s32 1, %s16
      %s26 = scalar_select %p23, %s25, %s16
      %p27 = scmp.ge.s32.totalorder %s26, 1
      %s28 = scalar_select %p27, 0, %s26
      %s29 = ssub.s32 %s16, %s28
      %s30 = ssub.s32 %s17, %s24
      %s31 = sor.u32 %s29, %s30
      %p32 = scmp.eq.s32.totalorder %s31, 0
      %s34 = sadd.s32 %s33, 1
      %s35 = scalar_select %p32, %s33, %s34
      %p38 = pneg %p32
      %p39 = scmp.eq.s32.totalorder %s9, 1
      %p40 = por %p38, %p39
      %p41 = scmp.ne.s32.totalorder %s33, %s36
      %p42 = scmp.eq.s32.totalorder %s9, 0
      %p43 = por %p41, %p42
      %p44 = scmp.ne.s32.totalorder %s33, %s36
      %p45 = scmp.eq.s32.totalorder %s14, 1
      %p46 = por %p44, %p45
      %p47 = scmp.ne.s32.totalorder %s36, %s37
      %p48 = scmp.eq.s32.totalorder %s14, 0
      %p49 = por %p47, %p48
      %p50 = scmp.ne.s32.totalorder %s36, %s37
      %p51 = scmp.eq.s32.totalorder %s15, 1
      %p52 = por %p50, %p51
      %p54 = scmp.ne.s32.totalorder %s37, %s53
      %p55 = scmp.eq.s32.totalorder %s15, 0
      %p56 = por %p54, %p55
      %s57 = ssub.s32 %s17, %s24
      %p58 = scmp.eq.s32.totalorder %s57, 0
      %s60 = sadd.s32 %s59, 1
      %s61 = scalar_select %p58, %s59, %s60
      %p64 = pneg %p58
      %p65 = scmp.eq.s32.totalorder %s9, 1
      %p66 = por %p64, %p65
      %p67 = scmp.ne.s32.totalorder %s59, %s62
      %p68 = scmp.eq.s32.totalorder %s9, 0
      %p69 = por %p67, %p68
      %p70 = scmp.ne.s32.totalorder %s59, %s62
      %p71 = scmp.eq.s32.totalorder %s14, 1
      %p72 = por %p70, %p71
      %p73 = scmp.ne.s32.totalorder %s62, %s63
      %p74 = scmp.eq.s32.totalorder %s14, 0
      %p75 = por %p73, %p74
      %p76 = scmp.ne.s32.totalorder %s62, %s63
      %p77 = scmp.eq.s32.totalorder %s15, 1
      %p78 = por %p76, %p77
      %p80 = scmp.ne.s32.totalorder %s63, %s79
      %p81 = scmp.eq.s32.totalorder %s15, 0
      %p82 = por %p80, %p81
      %s83 = ssub.s32 %s17, %s24
      %p84 = scmp.eq.s32.totalorder %s83, 0
      %s86 = sadd.s32 %s85, 1
      %s87 = scalar_select %p84, %s85, %s86
      %p90 = pneg %p84
      %p91 = scmp.eq.s32.totalorder %s9, 1
      %p92 = por %p90, %p91
      %p93 = scmp.ne.s32.totalorder %s85, %s88
      %p94 = scmp.eq.s32.totalorder %s9, 0
      %p95 = por %p93, %p94
      %p96 = scmp.ne.s32.totalorder %s85, %s88
      %p97 = scmp.eq.s32.totalorder %s14, 1
      %p98 = por %p96, %p97
      %p99 = scmp.ne.s32.totalorder %s88, %s89
      %p100 = scmp.eq.s32.totalorder %s14, 0
      %p101 = por %p99, %p100
      %p102 = scmp.ne.s32.totalorder %s88, %s89
      %p103 = scmp.eq.s32.totalorder %s15, 1
      %p104 = por %p102, %p103
      %p106 = scmp.ne.s32.totalorder %s89, %s105
      %p107 = scmp.eq.s32.totalorder %s15, 0
      %p108 = por %p106, %p107
      %s109 = ssub.s32 %s16, %s28
      %s110 = ssub.s32 %s17, %s24
      %s111 = sor.u32 %s109, %s110
      %p112 = scmp.eq.s32.totalorder %s111, 0
      %s114 = sadd.s32 %s113, 1
      %s115 = scalar_select %p112, %s113, %s114
      %p118 = pneg %p112
      %p119 = scmp.eq.s32.totalorder %s9, 1
      %p120 = por %p118, %p119
      %p121 = scmp.ne.s32.totalorder %s113, %s116
      %p122 = scmp.eq.s32.totalorder %s9, 0
      %p123 = por %p121, %p122
      %p124 = scmp.ne.s32.totalorder %s113, %s116
      %p125 = scmp.eq.s32.totalorder %s14, 1
      %p126 = por %p124, %p125
      %p127 = scmp.ne.s32.totalorder %s116, %s117
      %p128 = scmp.eq.s32.totalorder %s14, 0
      %p129 = por %p127, %p128
      %p130 = scmp.ne.s32.totalorder %s116, %s117
      %p131 = scmp.eq.s32.totalorder %s15, 1
      %p132 = por %p130, %p131
      %p134 = scmp.ne.s32.totalorder %s117, %s133
      %p135 = scmp.eq.s32.totalorder %s15, 0
      %p136 = por %p134, %p135
      %p137 = scmp.le.s32.totalorder 1, %s9
      %p138 = scmp.lt.s32.totalorder %s9, 3
      %p139 = pnand %p137, %p138
      %p140 = pneg %p139
      // Predicated region
      $region9: #{_lambda_.1} parent=5 // pred_check
        _
      $region10: #{_lambda_.1} parent=5 // pred_check_branch
        %142 = sbr.rel (%p139) target = $region12
      $region11: #{_lambda_.1} parent=5 // pred_region
        %s143 = ssub.s32 %s9, 1
      $region12: #{_lambda_.1} parent=5 // pred_fallthru
        _
      %p144 = scmp.lt.s32.totalorder %s9, 2
      // Predicated region
      $region13: #{_lambda_.1} parent=5 // pred_check
        %p145 = pneg %p144
      $region14: #{_lambda_.1} parent=5 // pred_check_branch
        %147 = sbr.rel (%p145) target = $region16
      $region15: #{_lambda_.1} parent=5 // pred_region
        // Predicated region
        $region17: #{_lambda_.1} parent=15 // pred_check
          %p148 = pneg %p43
        $region18: #{_lambda_.1} parent=15 // pred_check_branch
          %150 = sbr.rel (%p148) target = $region20
        $region19: #{_lambda_.1} parent=15 // pred_region
          %s151 = sand.u32 %s33, 1
          %s152 = sand.u32 %s33, 1
          %s153 = smul.addr %s152, 32
          %s154 = scalar_lea.vmem [#allocation2], %s153
          %s155 = smul.u32 4, %s16
          %s156 = smul.u32 4, %s17
          %s157 = ssub.s32 1, %s155
          %s158 = smul.u32 32, %s157
          %s159 = smul.u32 %s158, 4
          %p160 = scmp.ne.s32.totalorder 0, %s159
          %s161 = smul.addr %s155, 8
          %s162 = sadd.s32 %s156, %s161
          %s163 = smul.addr %s162, 2
          %s164 = scalar_lea.vmem %s0, %s163
          // Predicated region
          $region21: #{_lambda_.1} parent=19 // pred_check
            %p165 = pneg %p160
          $region22: #{_lambda_.1} parent=19 // pred_check_branch
            %167 = sbr.rel (%p165) target = $region24
          $region23: #{_lambda_.1} parent=19 // pred_region
            // Predicated region
            $region25: #{_lambda_.1} parent=23 // pred_check
              _
            $region26: #{_lambda_.1} parent=23 // pred_check_branch
              %169 = sbr.rel (0) target = $region28
            $region27: #{_lambda_.1} parent=23 // pred_region
              // Predicated region
              $region40: #{_lambda_.1} parent=27 // pred_check
                _
              $region41: #{_lambda_.1} parent=27 // pred_check_branch
                %192 = sbr.rel (0) target = $region43
              $region42: #{_lambda_.1} parent=27 // pred_region
                // While loop
                $region44: #{_lambda_.1} parent=42 // loop_pre_header
                  _
                $region45: #{_lambda_.1} parent=42 // loop_header
                  %s194 = sphi 0, %s196
                  %p195 = scmp.ge.s32.totalorder %s194, %s157
                  %s199 = sphi 0, %s206
                  %s200 = sphi %s164, %s209
                  %s201 = sphi %s154, %s210
                $region46: #{_lambda_.1} parent=42 // loop_header_branch
                  %198 = sbr.rel (%p195) target = $region50
                $region47: #{_lambda_.1} parent=42 // loop_body
                  %v202 = vld [vmem:[%s200] sm:$0xff]
                  %203 = vst [vmem:[%s201] sm:$0xff] %v202
                  %s204 = sadd.s32 1, %s199
                  %p205 = scmp.ge.s32.totalorder %s204, %s157
                  %s206 = scalar_select %p205, 0, %s204
                  %s207 = smul.u32 %s206, 16
                  %s208 = smul.u32 %s206, 8
                  %s209 = scalar_lea.vmem %s164, %s207
                  %s210 = scalar_lea.vmem %s154, %s208 [#allocation2]
                $region48: #{_lambda_.1} parent=42 // loop_footer
                  %s196 = sadd.s32 %s194, 1
                $region49: #{_lambda_.1} parent=42 // loop_footer_branch
                  %193 = sbr.rel target = $region45
                $region50: #{_lambda_.1} parent=42 // loop_exit
                  _
              $region43: #{_lambda_.1} parent=27 // pred_fallthru
                _
              // Predicated region
              $region51: #{_lambda_.1} parent=27 // pred_check
                _
              $region52: #{_lambda_.1} parent=27 // pred_check_branch
                %212 = sbr.rel target = $region54
              $region53: #{_lambda_.1} parent=27 // pred_region
                _
              $region54: #{_lambda_.1} parent=27 // pred_fallthru
                _
            $region28: #{_lambda_.1} parent=23 // pred_fallthru
              _
            // Predicated region
            $region29: #{_lambda_.1} parent=23 // pred_check
              _
            $region30: #{_lambda_.1} parent=23 // pred_check_branch
              %171 = sbr.rel target = $region32
            $region31: #{_lambda_.1} parent=23 // pred_region
              // While loop
              $region33: #{_lambda_.1} parent=31 // loop_pre_header
                _
              $region34: #{_lambda_.1} parent=31 // loop_header
                %s174 = sphi 0, %s176
                %p175 = scmp.ge.s32.totalorder %s174, %s157
                %s179 = sphi 0, %s186
                %s180 = sphi %s164, %s189
                %s181 = sphi %s154, %s190
              $region35: #{_lambda_.1} parent=31 // loop_header_branch
                %178 = sbr.rel (%p175) target = $region39
              $region36: #{_lambda_.1} parent=31 // loop_body
                %v182 = vld [vmem:[%s180] sm:$0xff]
                %183 = vst [vmem:[%s181] sm:$0xff] %v182
                %s184 = sadd.s32 1, %s179
                %p185 = scmp.ge.s32.totalorder %s184, %s157
                %s186 = scalar_select %p185, 0, %s184
                %s187 = smul.u32 %s186, 16
                %s188 = smul.u32 %s186, 8
                %s189 = scalar_lea.vmem %s164, %s187
                %s190 = scalar_lea.vmem %s154, %s188 [#allocation2]
              $region37: #{_lambda_.1} parent=31 // loop_footer
                %s176 = sadd.s32 %s174, 1
              $region38: #{_lambda_.1} parent=31 // loop_footer_branch
                %173 = sbr.rel target = $region34
              $region39: #{_lambda_.1} parent=31 // loop_exit
                _
            $region32: #{_lambda_.1} parent=23 // pred_fallthru
              _
          $region24: #{_lambda_.1} parent=19 // pred_fallthru
            _
          %213 = vnop
        $region20: #{_lambda_.1} parent=15 // pred_fallthru
          _
        // Predicated region
        $region55: #{_lambda_.1} parent=15 // pred_check
          %p214 = pneg %p69
        $region56: #{_lambda_.1} parent=15 // pred_check_branch
          %216 = sbr.rel (%p214) target = $region58
        $region57: #{_lambda_.1} parent=15 // pred_region
          %s217 = smul.u32 4, %s17
          %p218 = scmp.lt.s32.totalorder %s217, 7
          %s219 = scalar_select %p218, %s217, 7
          %s220 = scalar_lea.vmem %s1, %s219
          %s221 = smul.u32 4, %s17
        $region58: #{_lambda_.1} parent=15 // pred_fallthru
          _
        // Predicated region
        $region59: #{_lambda_.1} parent=15 // pred_check
          %p222 = pneg %p95
        $region60: #{_lambda_.1} parent=15 // pred_check_branch
          %224 = sbr.rel (%p222) target = $region62
        $region61: #{_lambda_.1} parent=15 // pred_region
          %s225 = smul.u32 4, %s17
          %p226 = scmp.lt.s32.totalorder %s225, 7
          %s227 = scalar_select %p226, %s225, 7
          %s228 = scalar_lea.vmem %s2, %s227
          %s229 = smul.u32 4, %s17
        $region62: #{_lambda_.1} parent=15 // pred_fallthru
          _
      $region16: #{_lambda_.1} parent=5 // pred_fallthru
        _
      %p230 = scmp.le.s32.totalorder 1, %s9
      %p231 = scmp.lt.s32.totalorder %s9, 3
      %p232 = pnand %p230, %p231
      %p233 = pneg %p232
      // Predicated region
      $region63: #{_lambda_.1} parent=5 // pred_check
        _
      $region64: #{_lambda_.1} parent=5 // pred_check_branch
        %235 = sbr.rel (%p232) target = $region66
      $region65: #{_lambda_.1} parent=5 // pred_region
        %s236 = ssub.s32 %s9, 1
        %s237 = sand.u32 %s36, 1
        %s238 = sand.u32 %s36, 1
        %s239 = smul.addr %s238, 32
        %s240 = scalar_lea.vmem [#allocation2], %s239
        // Predicated region
        $region67: #{_lambda_.1} parent=65 // pred_check
          %p241 = pneg %p49
        $region68: #{_lambda_.1} parent=65 // pred_check_branch
          %243 = sbr.rel (%p241) target = $region70
        $region69: #{_lambda_.1} parent=65 // pred_region
          _
        $region70: #{_lambda_.1} parent=65 // pred_fallthru
          _
        %s244 = sand.u32 %s36, 1
        %s245 = sand.u32 %s36, 1
        %s246 = smul.addr %s245, 32
        %s247 = scalar_lea.vmem [#allocation2], %s246
        %p248 = pneg %p49
        %p249 = pneg %p46
        %s250 = smul.u32 4, %s19
        %p251 = scmp.lt.s32.totalorder %s250, 7
        %s252 = scalar_select %p251, %s250, 7
        %s253 = scalar_lea.vmem %s1, %s252
        %p254 = pneg %p75
        %p255 = pneg %p72
        %s256 = smul.u32 4, %s19
        %p257 = scmp.lt.s32.totalorder %s256, 7
        %s258 = scalar_select %p257, %s256, 7
        %s259 = scalar_lea.vmem %s2, %s258
        %p260 = pneg %p101
        %p261 = pneg %p98
        %p262 = pneg %p129
        %p263 = pneg %p126
        %s264 = sand.u32 %s116, 1
        %s265 = sand.u32 %s116, 1
        %s266 = smul.addr %s265, 32
        %s267 = scalar_lea.vmem [#allocation3], %s266
        %s268 = smul.u32 4, %s18
        %s269 = smul.u32 4, %s19
        %s270 = ssub.s32 1, %s268
        %s271 = smul.u32 32, %s270
        %s272 = smul.u32 %s271, 4
        %s273 = smul.u32 4, %s19
        %p274 = scmp.lt.s32.totalorder %s273, 7
        %s275 = scalar_select %p274, %s273, 7
        %s276 = scalar_lea.vmem %s1, %s275
        %s277 = smul.u32 4, %s19
        %s278 = smul.u32 4, %s19
        %p279 = scmp.lt.s32.totalorder %s278, 7
        %s280 = scalar_select %p279, %s278, 7
        %s281 = scalar_lea.vmem %s2, %s280
        %s282 = smul.u32 4, %s19
        %s283 = smul.u32 4, %s18
        %s284 = smul.u32 4, %s19
        %s285 = ssub.s32 1, %s283
        %s286 = smul.u32 32, %s285
        %s287 = smul.u32 %s286, 4
        %v288 = vld [vmem:[%s240] sm:$0xff]
        %v289 = vld [vmem:[%s240 + $0x8] sm:$0xff]
        %v290 = vld [vmem:[%s240 + $0x10] sm:$0xff]
        %v291 = vld [vmem:[%s240 + $0x18] sm:$0xff]
        %v292 = vld [vmem:[%s276] sm:$0xf]
        %v294 = vlaneseq
        %v295 = vshrl.u32 %v294, 7
        %v296 = vsub.s32 0, %v295
        %v297 = vrot.slane %v292, %v296
        %v298 = vlaneseq
        %v299 = vshrl.u32 %v298, 7
        %v300 = vsub.s32 1, %v299
        %v301 = vrot.slane %v292, %v300
        %v302 = vlaneseq
        %v303 = vshrl.u32 %v302, 7
        %v304 = vsub.s32 2, %v303
        %v305 = vrot.slane %v292, %v304
        %v306 = vlaneseq
        %v307 = vshrl.u32 %v306, 7
        %v308 = vsub.s32 3, %v307
        %v309 = vrot.slane %v292, %v308
        %v310 = vcombine.low %v297, %v301
        %v311 = vcombine.high %v297, %v301
        %v312 = vcombine.low %v305, %v309
        %v313 = vcombine.high %v305, %v309
        %v315 = vunpack.c.l.s4 1983009808
        %v316 = vunpack.c.0.s8 %v315
        %v317 = vlaneseq
        %v318 = vshrl.u32 %v317, 7
        %v319 = vsub.s32 %v316, %v318
        %v320 = vrot.slane %v310, %v319
        %v322 = vunpack.c.l.s4 1983009808
        %v323 = vunpack.c.0.s8 %v322
        %v324 = vlaneseq
        %v325 = vshrl.u32 %v324, 7
        %v326 = vsub.s32 %v323, %v325
        %v327 = vrot.slane %v311, %v326
        %v329 = vunpack.c.l.s4 1983009808
        %v330 = vunpack.c.0.s8 %v329
        %v331 = vlaneseq
        %v332 = vshrl.u32 %v331, 7
        %v333 = vsub.s32 %v330, %v332
        %v334 = vrot.slane %v312, %v333
        %v336 = vunpack.c.l.s4 1983009808
        %v337 = vunpack.c.0.s8 %v336
        %v338 = vlaneseq
        %v339 = vshrl.u32 %v338, 7
        %v340 = vsub.s32 %v337, %v339
        %v341 = vrot.slane %v313, %v340
        %v342 = vcombine.low %v320, %v334
        %v343 = vcombine.high %v320, %v334
        %v344 = vcombine.low %v327, %v341
        %v345 = vcombine.high %v327, %v341
        %v350 = vmul.f32 %v288, %v342
        %v351 = vmul.f32 %v289, %v343
        %v352 = vmul.f32 %v290, %v344
        %v353 = vmul.f32 %v291, %v345
        %v354 = vld [vmem:[%s281] sm:$0xf]
        %v356 = vlaneseq
        %v357 = vshrl.u32 %v356, 7
        %v358 = vsub.s32 0, %v357
        %v359 = vrot.slane %v354, %v358
        %v360 = vlaneseq
        %v361 = vshrl.u32 %v360, 7
        %v362 = vsub.s32 1, %v361
        %v363 = vrot.slane %v354, %v362
        %v364 = vlaneseq
        %v365 = vshrl.u32 %v364, 7
        %v366 = vsub.s32 2, %v365
        %v367 = vrot.slane %v354, %v366
        %v368 = vlaneseq
        %v369 = vshrl.u32 %v368, 7
        %v370 = vsub.s32 3, %v369
        %v371 = vrot.slane %v354, %v370
        %v372 = vcombine.low %v359, %v363
        %v373 = vcombine.high %v359, %v363
        %v374 = vcombine.low %v367, %v371
        %v375 = vcombine.high %v367, %v371
        %v377 = vunpack.c.l.s4 1983009808
        %v378 = vunpack.c.0.s8 %v377
        %v379 = vlaneseq
        %v380 = vshrl.u32 %v379, 7
        %v381 = vsub.s32 %v378, %v380
        %v382 = vrot.slane %v372, %v381
        %v384 = vunpack.c.l.s4 1983009808
        %v385 = vunpack.c.0.s8 %v384
        %v386 = vlaneseq
        %v387 = vshrl.u32 %v386, 7
        %v388 = vsub.s32 %v385, %v387
        %v389 = vrot.slane %v373, %v388
        %v391 = vunpack.c.l.s4 1983009808
        %v392 = vunpack.c.0.s8 %v391
        %v393 = vlaneseq
        %v394 = vshrl.u32 %v393, 7
        %v395 = vsub.s32 %v392, %v394
        %v396 = vrot.slane %v374, %v395
        %v398 = vunpack.c.l.s4 1983009808
        %v399 = vunpack.c.0.s8 %v398
        %v400 = vlaneseq
        %v401 = vshrl.u32 %v400, 7
        %v402 = vsub.s32 %v399, %v401
        %v403 = vrot.slane %v375, %v402
        %v404 = vcombine.low %v382, %v396
        %v405 = vcombine.high %v382, %v396
        %v406 = vcombine.low %v389, %v403
        %v407 = vcombine.high %v389, %v403
        %v412 = vadd.f32 %v350, %v404
        %v413 = vadd.f32 %v351, %v405
        %v414 = vadd.f32 %v352, %v406
        %v415 = vadd.f32 %v353, %v407
        %416 = vst [vmem:[%s267] sm:$0xff] %v412
        %417 = vst [vmem:[%s267 + $0x8] sm:$0xff] %v413
        %418 = vst [vmem:[%s267 + $0x10] sm:$0xff] %v414
        %419 = vst [vmem:[%s267 + $0x18] sm:$0xff] %v415
        %s420 = sand.u32 %s116, 1
        %s421 = sand.u32 %s116, 1
        %s422 = smul.addr %s421, 32
        %s423 = scalar_lea.vmem [#allocation3], %s422
        // Predicated region
        $region71: #{_lambda_.1} parent=65 // pred_check
          %p424 = pneg %p126
        $region72: #{_lambda_.1} parent=65 // pred_check_branch
          %426 = sbr.rel (%p424) target = $region74
        $region73: #{_lambda_.1} parent=65 // pred_region
          %s427 = smul.u32 4, %s18
          %s428 = smul.u32 4, %s19
          %s429 = ssub.s32 1, %s427
          %s430 = smul.u32 32, %s429
          %s431 = smul.u32 %s430, 4
          %p432 = scmp.ne.s32.totalorder 0, %s431
          %s433 = smul.addr %s427, 8
          %s434 = sadd.s32 %s428, %s433
          %s435 = smul.addr %s434, 2
          %s436 = scalar_lea.vmem %s3, %s435
          // Predicated region
          $region75: #{_lambda_.1} parent=73 // pred_check
            %p437 = pneg %p432
          $region76: #{_lambda_.1} parent=73 // pred_check_branch
            %439 = sbr.rel (%p437) target = $region78
          $region77: #{_lambda_.1} parent=73 // pred_region
            // Predicated region
            $region79: #{_lambda_.1} parent=77 // pred_check
              _
            $region80: #{_lambda_.1} parent=77 // pred_check_branch
              %441 = sbr.rel (0) target = $region82
            $region81: #{_lambda_.1} parent=77 // pred_region
              // Predicated region
              $region94: #{_lambda_.1} parent=81 // pred_check
                _
              $region95: #{_lambda_.1} parent=81 // pred_check_branch
                %464 = sbr.rel (0) target = $region97
              $region96: #{_lambda_.1} parent=81 // pred_region
                // While loop
                $region98: #{_lambda_.1} parent=96 // loop_pre_header
                  _
                $region99: #{_lambda_.1} parent=96 // loop_header
                  %s466 = sphi 0, %s468
                  %p467 = scmp.ge.s32.totalorder %s466, %s429
                  %s471 = sphi 0, %s478
                  %s472 = sphi %s423, %s481
                  %s473 = sphi %s436, %s482
                $region100: #{_lambda_.1} parent=96 // loop_header_branch
                  %470 = sbr.rel (%p467) target = $region104
                $region101: #{_lambda_.1} parent=96 // loop_body
                  %v474 = vld [vmem:[%s472] sm:$0xff]
                  %475 = vst [vmem:[%s473] sm:$0xff] %v474
                  %s476 = sadd.s32 1, %s471
                  %p477 = scmp.ge.s32.totalorder %s476, %s429
                  %s478 = scalar_select %p477, 0, %s476
                  %s479 = smul.u32 %s478, 8
                  %s480 = smul.u32 %s478, 16
                  %s481 = scalar_lea.vmem %s423, %s479 [#allocation3]
                  %s482 = scalar_lea.vmem %s436, %s480
                $region102: #{_lambda_.1} parent=96 // loop_footer
                  %s468 = sadd.s32 %s466, 1
                $region103: #{_lambda_.1} parent=96 // loop_footer_branch
                  %465 = sbr.rel target = $region99
                $region104: #{_lambda_.1} parent=96 // loop_exit
                  _
              $region97: #{_lambda_.1} parent=81 // pred_fallthru
                _
              // Predicated region
              $region105: #{_lambda_.1} parent=81 // pred_check
                _
              $region106: #{_lambda_.1} parent=81 // pred_check_branch
                %484 = sbr.rel target = $region108
              $region107: #{_lambda_.1} parent=81 // pred_region
                _
              $region108: #{_lambda_.1} parent=81 // pred_fallthru
                _
            $region82: #{_lambda_.1} parent=77 // pred_fallthru
              _
            // Predicated region
            $region83: #{_lambda_.1} parent=77 // pred_check
              _
            $region84: #{_lambda_.1} parent=77 // pred_check_branch
              %443 = sbr.rel target = $region86
            $region85: #{_lambda_.1} parent=77 // pred_region
              // While loop
              $region87: #{_lambda_.1} parent=85 // loop_pre_header
                _
              $region88: #{_lambda_.1} parent=85 // loop_header
                %s446 = sphi 0, %s448
                %p447 = scmp.ge.s32.totalorder %s446, %s429
                %s451 = sphi 0, %s458
                %s452 = sphi %s423, %s461
                %s453 = sphi %s436, %s462
              $region89: #{_lambda_.1} parent=85 // loop_header_branch
                %450 = sbr.rel (%p447) target = $region93
              $region90: #{_lambda_.1} parent=85 // loop_body
                %v454 = vld [vmem:[%s452] sm:$0xff]
                %455 = vst [vmem:[%s453] sm:$0xff] %v454
                %s456 = sadd.s32 1, %s451
                %p457 = scmp.ge.s32.totalorder %s456, %s429
                %s458 = scalar_select %p457, 0, %s456
                %s459 = smul.u32 %s458, 8
                %s460 = smul.u32 %s458, 16
                %s461 = scalar_lea.vmem %s423, %s459 [#allocation3]
                %s462 = scalar_lea.vmem %s436, %s460
              $region91: #{_lambda_.1} parent=85 // loop_footer
                %s448 = sadd.s32 %s446, 1
              $region92: #{_lambda_.1} parent=85 // loop_footer_branch
                %445 = sbr.rel target = $region88
              $region93: #{_lambda_.1} parent=85 // loop_exit
                _
            $region86: #{_lambda_.1} parent=77 // pred_fallthru
              _
          $region78: #{_lambda_.1} parent=73 // pred_fallthru
            _
          %485 = vnop
        $region74: #{_lambda_.1} parent=65 // pred_fallthru
          _
      $region66: #{_lambda_.1} parent=5 // pred_fallthru
        _
      %p486 = scmp.le.s32.totalorder 2, %s9
      // Predicated region
      $region109: #{_lambda_.1} parent=5 // pred_check
        %p487 = pneg %p486
      $region110: #{_lambda_.1} parent=5 // pred_check_branch
        %489 = sbr.rel (%p487) target = $region112
      $region111: #{_lambda_.1} parent=5 // pred_region
        %s490 = ssub.s32 %s9, 2
        // Predicated region
        $region113: #{_lambda_.1} parent=111 // pred_check
          %p491 = pneg %p132
        $region114: #{_lambda_.1} parent=111 // pred_check_branch
          %493 = sbr.rel (%p491) target = $region116
        $region115: #{_lambda_.1} parent=111 // pred_region
          %s494 = sand.u32 %s117, 1
          %s495 = sand.u32 %s117, 1
          %s496 = smul.addr %s495, 32
          %s497 = scalar_lea.vmem [#allocation3], %s496
        $region116: #{_lambda_.1} parent=111 // pred_fallthru
          _
      $region112: #{_lambda_.1} parent=5 // pred_fallthru
        _
    $region6: #{_lambda_.1} parent=1 // loop_footer
      %s13 = sadd.s32 1, %s9
    $region7: #{_lambda_.1} parent=1 // loop_footer_branch
      %8 = sbr.rel target = $region3
    $region8: #{_lambda_.1} parent=1 // loop_exit
      _

</llo_original>
